<compile_context>
chip_gen: v7x
topology: tpu7x:2x2x1
jax: 0.10.0
libtpu: 0.0.40
codegen_flags: <defaults>
</compile_context>

<pallas_src>
import functools

import jax
import jax.numpy as jnp
from jax.experimental import pallas as pl
from jax.experimental.pallas import tpu as pltpu

LANES = 128                      # lane width (last dim of every tile)
ACC_ROWS = 512                   # fixed accumulator height (2 x 512x128x4B = 512 KiB)
MAX_TM = 2048                    # rows per grid step (8 MiB double-buffered inputs)
VMEM_LIMIT = 32 * 1024 * 1024    # explicit scoped-VMEM raise (v5e default is 16 MiB)
FLT_MIN_NORMAL = 1.1754944e-38   # smallest f32 normal; keeps approx-rcp finite
# TODO(synk): set True on v7x once a trace confirms CORE_PARALLEL both lowers
# and actually shards the leading axis across the two TensorCores.
USE_CORE_PARALLEL = False


@functools.lru_cache(maxsize=1)
def _detect_tensorcores():
    """Best-effort TensorCores-per-chip (v5e/v6e: 1, v7x: 2). Defaults to 1."""
    try:
        info = pltpu.get_tpu_info()
    except Exception:
        return 1
    for name in ("num_tensorcores", "tensorcores_per_chip", "num_cores",
                 "cores_per_chip", "core_count"):
        val = getattr(info, name, None)
        if val is None:
            continue
        try:
            val = int(val)
        except (TypeError, ValueError):
            continue
        if val >= 1:
            return min(val, 2)
    return 1


def _canberra_pair_kernel(cx_ref, nx_ref, cy_ref, ny_ref, out_ref,
                          accx_ref, accy_ref, *, total_rows, needs_mask):
    c = pl.program_id(0)                 # core-split axis
    i = pl.program_id(1)                 # reduction axis ("arbitrary")
    bpc = pl.num_programs(1)

    @pl.when(i == 0)
    def _init():
        accx_ref[...] = jnp.zeros_like(accx_ref)
        accy_ref[...] = jnp.zeros_like(accy_ref)

    acc_rows, lanes = accx_ref.shape
    tm = cx_ref.shape[0]
    folds = tm // acc_rows

    if needs_mask:
        # Narrow (tm, 1) mask; broadcasts into a single select per pair.
        # Rows >= total_rows come from clamped / partial blocks (garbage).
        blk = c * bpc + i                 # global (un-clamped) block id
        row_ids = blk * tm + jax.lax.broadcasted_iota(jnp.int32, (tm, 1), 0)
        row_valid = row_ids < total_rows
    else:
        row_valid = None

    def canberra_partial(a_ref, b_ref):
        a = a_ref[...].astype(jnp.float32)   # cast in-kernel (no wrapper copy)
        b = b_ref[...].astype(jnp.float32)
        num = jnp.abs(a - b)
        den = jnp.abs(a) + jnp.abs(b)
        # Clamp so the approx reciprocal never overflows; den == 0 implies
        # num == 0, so the 0/0 -> 0 convention falls out of num * (1/clamp).
        den_c = jnp.maximum(den, jnp.float32(FLT_MIN_NORMAL))
        r = pl.reciprocal(den_c, approx=True)          # EUP slot (cheap)
        r = r * (jnp.float32(2.0) - den_c * r)          # 1 Newton step (~1e-8 rel)
        frac = num * r
        if needs_mask:
            frac = jnp.where(row_valid, frac, jnp.float32(0.0))
        if folds > 1:
            # Free reshape (rows stay within (8,128) tile groups), then fold
            # into the fixed-height accumulator with elementwise VPU adds.
            frac = jnp.sum(frac.reshape(folds, acc_rows, lanes), axis=0)
        return frac

    # Pure elementwise VPU accumulation; no per-step cross-lane reduce.
    accx_ref[...] += canberra_partial(cx_ref, nx_ref)
    accy_ref[...] += canberra_partial(cy_ref, ny_ref)

    @pl.when(i == bpc - 1)
    def _finalize():
        # Two-level reduce (sublanes, then lanes) as cheap numerical hardening.
        out_ref[0, 0] = jnp.sum(jnp.sum(accx_ref[...], axis=0))
        out_ref[0, 1] = jnp.sum(jnp.sum(accy_ref[...], axis=0))


def _as_slab(x, rows):
    """Flatten and view as (rows, 128).

    A free metadata reshape when the element count is already rows*128; zero
    padding (neutral under the 0/0 -> 0 convention) otherwise.
    TODO(synk): mask a ragged lane tail in-kernel to avoid the pad copy."""
    flat = jnp.ravel(x)
    target = rows * LANES
    if flat.shape[0] != target:
        flat = jnp.pad(flat, (0, target - flat.shape[0]))
    return flat.reshape(rows, LANES)


@jax.jit
def deg_loss(cleanX, cleanY, noisyX, noisyY):
    assert cleanX.size == noisyX.size, "clean/noisy X must have equal sizes"
    assert cleanY.size == noisyY.size, "clean/noisy Y must have equal sizes"

    # Common row count for the X and Y slabs (shorter pair is zero-padded,
    # which is neutral for the Canberra sum).
    rows = max(pl.cdiv(int(cleanX.size), LANES),
               pl.cdiv(int(cleanY.size), LANES), 1)
    cx = _as_slab(cleanX, rows)
    nx = _as_slab(noisyX, rows)
    cy = _as_slab(cleanY, rows)
    ny = _as_slab(noisyY, rows)

    # Tile selection: tm == rows (single full block) for small inputs, else the
    # largest multiple of ACC_ROWS that fits both the data and MAX_TM.  tm is
    # always <= rows and either equals the full dim or is (8,128)-aligned.
    if rows <= ACC_ROWS:
        tm = rows
        acc_rows = rows
    else:
        tm = min(MAX_TM, (rows // ACC_ROWS) * ACC_ROWS)
        acc_rows = ACC_ROWS

    nblocks = pl.cdiv(rows, tm)
    ncores = min(_detect_tensorcores(), nblocks)   # 1 on single-TC chips
    bpc = pl.cdiv(nblocks, ncores)                 # blocks per core
    # Static: mask only needed when a partial or phantom block exists.
    needs_mask = (rows % tm != 0) or (ncores * bpc != nblocks)

    def tile_map(c, i):
        # Clamp phantom blocks (when ncores*bpc > nblocks); the in-kernel row
        # mask zeroes their contribution.
        return (jnp.minimum(c * bpc + i, nblocks - 1), 0)

    tile_spec = pl.BlockSpec((tm, LANES), tile_map)

    if ncores > 1 and USE_CORE_PARALLEL:
        dims = (pltpu.CORE_PARALLEL, pltpu.ARBITRARY)
    elif ncores > 1:
        dims = ("parallel", "arbitrary")
    else:
        dims = ("arbitrary", "arbitrary")

    nelems = int(cx.size + cy.size)
    bytes_accessed = sum(int(a.size) * a.dtype.itemsize
                         for a in (cx, nx, cy, ny)) + ncores * 2 * 4
    cost = pl.CostEstimate(flops=int(10 * nelems),
                           transcendentals=int(nelems),
                           bytes_accessed=int(bytes_accessed))

    partials = pl.pallas_call(
        functools.partial(_canberra_pair_kernel,
                          total_rows=rows, needs_mask=needs_mask),
        out_shape=jax.ShapeDtypeStruct((ncores, 2), jnp.float32),
        grid_spec=pltpu.PrefetchScalarGridSpec(
            num_scalar_prefetch=0,
            grid=(ncores, bpc),
            in_specs=[tile_spec, tile_spec, tile_spec, tile_spec],
            out_specs=pl.BlockSpec((1, 2), lambda c, i: (c, 0),
                                   memory_space=pltpu.SMEM),
            scratch_shapes=[
                pltpu.VMEM((acc_rows, LANES), jnp.float32),   # acc for X pair
                pltpu.VMEM((acc_rows, LANES), jnp.float32),   # acc for Y pair
            ],
        ),
        compiler_params=pltpu.CompilerParams(
            dimension_semantics=dims,
            vmem_limit_bytes=VMEM_LIMIT),
        cost_estimate=cost,
    )(cx, nx, cy, ny)

    lx = jnp.sum(partials[:, 0])
    ly = jnp.sum(partials[:, 1])
    return jnp.sqrt(lx * lx + ly * ly)


def _reference(cleanX, cleanY, noisyX, noisyY):
    def canberra(a, b):
        a = a.astype(jnp.float32)
        b = b.astype(jnp.float32)
        num = jnp.abs(a - b)
        den = jnp.abs(a) + jnp.abs(b)
        frac = jnp.where(den > 0, num / jnp.where(den > 0, den, 1.0), 0.0)
        return jnp.sum(frac)

    lx = canberra(cleanX, noisyX)
    ly = canberra(cleanY, noisyY)
    return jnp.sqrt(lx * lx + ly * ly)


if __name__ == "__main__":
    key = jax.random.PRNGKey(0)
    k1, k2, k3, k4 = jax.random.split(key, 4)

    # Case 1: small aligned curve (single full block, no mask / fold).
    # Case 2: ragged multi-block curve that exercises the accumulator fold,
    #         the partial-block row mask and the streaming reduction
    #         (looser tolerance: f32 summation-order differences).
    for (batch, seq), tol in (((2, 1024), 1e-5), ((128, 1200), 1e-4)):
        cleanX = jax.random.uniform(k1, (batch, seq), jnp.float32)
        cleanY = jax.random.uniform(k2, (batch, seq), jnp.float32)
        noisyX = cleanX + 0.05 * jax.random.normal(k3, (batch, seq), jnp.float32)
        noisyY = cleanY + 0.05 * jax.random.normal(k4, (batch, seq), jnp.float32)

        out = deg_loss(cleanX, cleanY, noisyX, noisyY)
        jax.block_until_ready(out)

        ref = _reference(cleanX, cleanY, noisyX, noisyY)
        assert jnp.allclose(out, ref, rtol=tol, atol=tol), (batch, seq, out, ref)

    print("KERNEL_OK")
</pallas_src>

<mosaic_0001>
module attributes {stable_mosaic.version = 11 : i64} {
  func.func @_canberra_pair_kernel(%arg0: i32, %arg1: i32, %arg2: memref<16x128xf32, #tpu.memory_space<vmem>>, %arg3: memref<16x128xf32, #tpu.memory_space<vmem>>, %arg4: memref<16x128xf32, #tpu.memory_space<vmem>>, %arg5: memref<16x128xf32, #tpu.memory_space<vmem>>, %arg6: memref<1x2xf32, #tpu.memory_space<smem>>, %arg7: memref<16x128xf32, #tpu.memory_space<vmem>>, %arg8: memref<16x128xf32, #tpu.memory_space<vmem>>) attributes {dimension_semantics = [#tpu.dimension_semantics<arbitrary>, #tpu.dimension_semantics<arbitrary>], iteration_bounds = array<i64: 1, 1>, scalar_prefetch = 0 : i64, scratch_operands = 2 : i64, tpu.core_type = #tpu.core_type<tc>, window_params = [{transform_indices = @transform_0, window_bounds = array<i64: 16, 128>}, {transform_indices = @transform_1, window_bounds = array<i64: 16, 128>}, {transform_indices = @transform_2, window_bounds = array<i64: 16, 128>}, {transform_indices = @transform_3, window_bounds = array<i64: 16, 128>}, {transform_indices = @transform_4, window_bounds = array<i64: 1, 2>}]} {
    %c0_i32 = arith.constant 0 : i32
    %0 = arith.cmpi eq, %arg1, %c0_i32 : i32
    %1 = arith.extui %0 : i1 to i32
    %c0_i32_0 = arith.constant 0 : i32
    %2 = arith.cmpi ne, %1, %c0_i32_0 : i32
    scf.if %2 {
      %cst_21 = arith.constant 0.000000e+00 : f32
      %42 = vector.broadcast %cst_21 : f32 to vector<16x128xf32>
      %c0_22 = arith.constant 0 : index
      %c0_23 = arith.constant 0 : index
      %43 = vector.load %arg7[%c0_22, %c0_23] : memref<16x128xf32, #tpu.memory_space<vmem>>, vector<16x128xf32>
      tpu.vector_store %arg7[%c0_22, %c0_23], %42 {strides = array<i32>} : memref<16x128xf32, #tpu.memory_space<vmem>>, vector<16x128xf32>,
      %cst_24 = arith.constant 0.000000e+00 : f32
      %44 = vector.broadcast %cst_24 : f32 to vector<16x128xf32>
      %c0_25 = arith.constant 0 : index
      %c0_26 = arith.constant 0 : index
      %45 = vector.load %arg8[%c0_25, %c0_26] : memref<16x128xf32, #tpu.memory_space<vmem>>, vector<16x128xf32>
      tpu.vector_store %arg8[%c0_25, %c0_26], %44 {strides = array<i32>} : memref<16x128xf32, #tpu.memory_space<vmem>>, vector<16x128xf32>,
    } else {
    }
    %c0 = arith.constant 0 : index
    %c0_1 = arith.constant 0 : index
    %3 = vector.load %arg7[%c0, %c0_1] : memref<16x128xf32, #tpu.memory_space<vmem>>, vector<16x128xf32>
    %c0_2 = arith.constant 0 : index
    %c0_3 = arith.constant 0 : index
    %4 = vector.load %arg2[%c0_2, %c0_3] : memref<16x128xf32, #tpu.memory_space<vmem>>, vector<16x128xf32>
    %c0_4 = arith.constant 0 : index
    %c0_5 = arith.constant 0 : index
    %5 = vector.load %arg3[%c0_4, %c0_5] : memref<16x128xf32, #tpu.memory_space<vmem>>, vector<16x128xf32>
    %6 = arith.subf %4, %5 : vector<16x128xf32>
    %7 = math.absf %6 : vector<16x128xf32>
    %8 = math.absf %4 : vector<16x128xf32>
    %9 = math.absf %5 : vector<16x128xf32>
    %10 = arith.addf %8, %9 : vector<16x128xf32>
    %cst = arith.constant 1.17549435E-38 : f32
    %11 = vector.broadcast %cst : f32 to vector<16x128xf32>
    %12 = arith.maximumf %10, %11 : vector<16x128xf32>
    %13 = tpu.reciprocal %12 {approx = true} : vector<16x128xf32> -> vector<16x128xf32>
    %14 = arith.mulf %12, %13 : vector<16x128xf32>
    %cst_6 = arith.constant 2.000000e+00 : f32
    %15 = vector.broadcast %cst_6 : f32 to vector<16x128xf32>
    %16 = arith.subf %15, %14 : vector<16x128xf32>
    %17 = arith.mulf %13, %16 : vector<16x128xf32>
    %18 = arith.mulf %7, %17 : vector<16x128xf32>
    %19 = arith.addf %3, %18 : vector<16x128xf32>
    %c0_7 = arith.constant 0 : index
    %c0_8 = arith.constant 0 : index
    %20 = vector.load %arg7[%c0_7, %c0_8] : memref<16x128xf32, #tpu.memory_space<vmem>>, vector<16x128xf32>
    tpu.vector_store %arg7[%c0_7, %c0_8], %19 {strides = array<i32>} : memref<16x128xf32, #tpu.memory_space<vmem>>, vector<16x128xf32>,
    %c0_9 = arith.constant 0 : index
    %c0_10 = arith.constant 0 : index
    %21 = vector.load %arg8[%c0_9, %c0_10] : memref<16x128xf32, #tpu.memory_space<vmem>>, vector<16x128xf32>
    %c0_11 = arith.constant 0 : index
    %c0_12 = arith.constant 0 : index
    %22 = vector.load %arg4[%c0_11, %c0_12] : memref<16x128xf32, #tpu.memory_space<vmem>>, vector<16x128xf32>
    %c0_13 = arith.constant 0 : index
    %c0_14 = arith.constant 0 : index
    %23 = vector.load %arg5[%c0_13, %c0_14] : memref<16x128xf32, #tpu.memory_space<vmem>>, vector<16x128xf32>
    %24 = arith.subf %22, %23 : vector<16x128xf32>
    %25 = math.absf %24 : vector<16x128xf32>
    %26 = math.absf %22 : vector<16x128xf32>
    %27 = math.absf %23 : vector<16x128xf32>
    %28 = arith.addf %26, %27 : vector<16x128xf32>
    %cst_15 = arith.constant 1.17549435E-38 : f32
    %29 = vector.broadcast %cst_15 : f32 to vector<16x128xf32>
    %30 = arith.maximumf %28, %29 : vector<16x128xf32>
    %31 = tpu.reciprocal %30 {approx = true} : vector<16x128xf32> -> vector<16x128xf32>
    %32 = arith.mulf %30, %31 : vector<16x128xf32>
    %cst_16 = arith.constant 2.000000e+00 : f32
    %33 = vector.broadcast %cst_16 : f32 to vector<16x128xf32>
    %34 = arith.subf %33, %32 : vector<16x128xf32>
    %35 = arith.mulf %31, %34 : vector<16x128xf32>
    %36 = arith.mulf %25, %35 : vector<16x128xf32>
    %37 = arith.addf %21, %36 : vector<16x128xf32>
    %c0_17 = arith.constant 0 : index
    %c0_18 = arith.constant 0 : index
    %38 = vector.load %arg8[%c0_17, %c0_18] : memref<16x128xf32, #tpu.memory_space<vmem>>, vector<16x128xf32>
    tpu.vector_store %arg8[%c0_17, %c0_18], %37 {strides = array<i32>} : memref<16x128xf32, #tpu.memory_space<vmem>>, vector<16x128xf32>,
    %c0_i32_19 = arith.constant 0 : i32
    %39 = arith.cmpi eq, %arg1, %c0_i32_19 : i32
    %40 = arith.extui %39 : i1 to i32
    %c0_i32_20 = arith.constant 0 : i32
    %41 = arith.cmpi ne, %40, %c0_i32_20 : i32
    scf.if %41 {
      %c0_21 = arith.constant 0 : index
      %c0_22 = arith.constant 0 : index
      %42 = vector.load %arg7[%c0_21, %c0_22] : memref<16x128xf32, #tpu.memory_space<vmem>>, vector<16x128xf32>
      %cst_23 = arith.constant dense<0.000000e+00> : vector<128xf32>
      %43 = vector.multi_reduction <add>, %42, %cst_23 [0] : vector<16x128xf32> to vector<128xf32>
      %44 = vector.shape_cast %43 : vector<128xf32> to vector<1x128xf32>
      %cst_24 = arith.constant dense<0.000000e+00> : vector<1xf32>
      %45 = vector.multi_reduction <add>, %44, %cst_24 [1] : vector<1x128xf32> to vector<1xf32>
      %46 = vector.shape_cast %45 : vector<1xf32> to vector<1x1xf32>
      %47 = vector.extract %46[0, 0] : f32 from vector<1x1xf32>
      %c0_25 = arith.constant 0 : index
      %c0_26 = arith.constant 0 : index
      %48 = memref.load %arg6[%c0_25, %c0_26] : memref<1x2xf32, #tpu.memory_space<smem>>
      memref.store %47, %arg6[%c0_25, %c0_26] : memref<1x2xf32, #tpu.memory_space<smem>>
      %c0_27 = arith.constant 0 : index
      %c0_28 = arith.constant 0 : index
      %49 = vector.load %arg8[%c0_27, %c0_28] : memref<16x128xf32, #tpu.memory_space<vmem>>, vector<16x128xf32>
      %cst_29 = arith.constant dense<0.000000e+00> : vector<128xf32>
      %50 = vector.multi_reduction <add>, %49, %cst_29 [0] : vector<16x128xf32> to vector<128xf32>
      %51 = vector.shape_cast %50 : vector<128xf32> to vector<1x128xf32>
      %cst_30 = arith.constant dense<0.000000e+00> : vector<1xf32>
      %52 = vector.multi_reduction <add>, %51, %cst_30 [1] : vector<1x128xf32> to vector<1xf32>
      %53 = vector.shape_cast %52 : vector<1xf32> to vector<1x1xf32>
      %54 = vector.extract %53[0, 0] : f32 from vector<1x1xf32>
      %c0_31 = arith.constant 0 : index
      %c1 = arith.constant 1 : index
      %55 = memref.load %arg6[%c0_31, %c1] : memref<1x2xf32, #tpu.memory_space<smem>>
      memref.store %54, %arg6[%c0_31, %c1] : memref<1x2xf32, #tpu.memory_space<smem>>
    } else {
    }
    return
  }
  func.func @transform_0(%arg0: i32, %arg1: i32) -> (i32, i32) {
    %c1_i32 = arith.constant 1 : i32
    %0 = arith.muli %arg0, %c1_i32 : i32
    %1 = arith.addi %0, %arg1 : i32
    %c0_i32 = arith.constant 0 : i32
    %2 = arith.minsi %1, %c0_i32 : i32
    %c0_i32_0 = arith.constant 0 : i32
    %c0_i32_1 = arith.constant 0 : i32
    return %2, %c0_i32_0 : i32, i32
  }
  func.func @transform_1(%arg0: i32, %arg1: i32) -> (i32, i32) {
    %c1_i32 = arith.constant 1 : i32
    %0 = arith.muli %arg0, %c1_i32 : i32
    %1 = arith.addi %0, %arg1 : i32
    %c0_i32 = arith.constant 0 : i32
    %2 = arith.minsi %1, %c0_i32 : i32
    %c0_i32_0 = arith.constant 0 : i32
    %c0_i32_1 = arith.constant 0 : i32
    return %2, %c0_i32_0 : i32, i32
  }
  func.func @transform_2(%arg0: i32, %arg1: i32) -> (i32, i32) {
    %c1_i32 = arith.constant 1 : i32
    %0 = arith.muli %arg0, %c1_i32 : i32
    %1 = arith.addi %0, %arg1 : i32
    %c0_i32 = arith.constant 0 : i32
    %2 = arith.minsi %1, %c0_i32 : i32
    %c0_i32_0 = arith.constant 0 : i32
    %c0_i32_1 = arith.constant 0 : i32
    return %2, %c0_i32_0 : i32, i32
  }
  func.func @transform_3(%arg0: i32, %arg1: i32) -> (i32, i32) {
    %c1_i32 = arith.constant 1 : i32
    %0 = arith.muli %arg0, %c1_i32 : i32
    %1 = arith.addi %0, %arg1 : i32
    %c0_i32 = arith.constant 0 : i32
    %2 = arith.minsi %1, %c0_i32 : i32
    %c0_i32_0 = arith.constant 0 : i32
    %c0_i32_1 = arith.constant 0 : i32
    return %2, %c0_i32_0 : i32, i32
  }
  func.func @transform_4(%arg0: i32, %arg1: i32) -> (i32, i32) {
    %c0_i32 = arith.constant 0 : i32
    %c0_i32_0 = arith.constant 0 : i32
    return %arg0, %c0_i32 : i32, i32
  }
}

</mosaic_0001>

<llo_original>
// kernel: deg_loss.1
$region0: #{deg_loss.1}
  #allocation0 [shape = 'u32[]', space=smem, size = 0x4, offset = 0x4, fixed_abs, tag = 'smem constant byte address 0x4 - core index']
  #allocation1 [shape = 'u32[144,128]{1,0:T(1,128)}', space=vmem, size = 0x12000, scoped, tag = 'internal scratch']
  #allocation2 [shape = 'f32[16,128]{1,0:T(8,128)}', space=vmem, size = 0x2000, scoped, tag = 'scratch operand']
  #allocation3 [shape = 'f32[16,128]{1,0:T(8,128)}', space=vmem, size = 0x2000, scoped, tag = 'scratch operand']
  %s0 = inlined_call_operand.vmem [shape: f32[16,128], index: 0, kind: input, shape index: {}]
  %s1 = inlined_call_operand.vmem [shape: f32[16,128], index: 1, kind: input, shape index: {}]
  %s2 = inlined_call_operand.vmem [shape: f32[16,128], index: 2, kind: input, shape index: {}]
  %s3 = inlined_call_operand.vmem [shape: f32[16,128], index: 3, kind: input, shape index: {}]
  %s4 = inlined_call_operand.vmem [shape: f32[1,2], index: 4, kind: output, shape index: {}]
  %s5 = sld [smem:[#allocation0]]
  $region34: #{deg_loss.1} parent=0
    _
  %s7 = ssub.s32 1, %s5
  %s8 = scalar_select 0, %s7, %s5
  $region1: #{deg_loss.1} parent=0
    #allocation4 [shape = 'u8[512]{0}', space=smem, size = 0x200, scoped, tag = 'output window, operand 0, single buffered']
    #allocation5 [shape = 's32[1]{0}', space=sflag, size = 0x4, scoped, tag = 'scoped memory for deg_loss.1']
    %9 = vsyncpa [#allocation5], 0
    // Predicated region
    $region2: #{deg_loss.1} parent=1 // pred_check
      _
    $region3: #{deg_loss.1} parent=1 // pred_check_branch
      %11 = sbr.rel (0) target = $region5
    $region4: #{deg_loss.1} parent=1 // pred_region
      %s12 = sadd.s32 0, 0
      %p13 = scmp.lt.s32.totalorder %s12, 0
      %s14 = scalar_select %p13, %s12, 0
      %s15 = smul.u32 2, %s14
      %p16 = scmp.lt.s32.totalorder %s15, 1
      %s17 = scalar_select %p16, %s15, 1
      %s18 = smul.addr %s17, 8
      %s19 = scalar_lea.vmem %s0, %s18
      %s20 = sadd.s32 0, 0
      %p21 = scmp.lt.s32.totalorder %s20, 0
      %s22 = scalar_select %p21, %s20, 0
      %s23 = smul.u32 2, %s22
    $region5: #{deg_loss.1} parent=1 // pred_fallthru
      _
    // Predicated region
    $region6: #{deg_loss.1} parent=1 // pred_check
      _
    $region7: #{deg_loss.1} parent=1 // pred_check_branch
      %25 = sbr.rel (0) target = $region9
    $region8: #{deg_loss.1} parent=1 // pred_region
      %s26 = sadd.s32 0, 0
      %p27 = scmp.lt.s32.totalorder %s26, 0
      %s28 = scalar_select %p27, %s26, 0
      %s29 = smul.u32 2, %s28
      %p30 = scmp.lt.s32.totalorder %s29, 1
      %s31 = scalar_select %p30, %s29, 1
      %s32 = smul.addr %s31, 8
      %s33 = scalar_lea.vmem %s1, %s32
      %s34 = sadd.s32 0, 0
      %p35 = scmp.lt.s32.totalorder %s34, 0
      %s36 = scalar_select %p35, %s34, 0
      %s37 = smul.u32 2, %s36
    $region9: #{deg_loss.1} parent=1 // pred_fallthru
      _
    // Predicated region
    $region10: #{deg_loss.1} parent=1 // pred_check
      _
    $region11: #{deg_loss.1} parent=1 // pred_check_branch
      %39 = sbr.rel (0) target = $region13
    $region12: #{deg_loss.1} parent=1 // pred_region
      %s40 = sadd.s32 0, 0
      %p41 = scmp.lt.s32.totalorder %s40, 0
      %s42 = scalar_select %p41, %s40, 0
      %s43 = smul.u32 2, %s42
      %p44 = scmp.lt.s32.totalorder %s43, 1
      %s45 = scalar_select %p44, %s43, 1
      %s46 = smul.addr %s45, 8
      %s47 = scalar_lea.vmem %s2, %s46
      %s48 = sadd.s32 0, 0
      %p49 = scmp.lt.s32.totalorder %s48, 0
      %s50 = scalar_select %p49, %s48, 0
      %s51 = smul.u32 2, %s50
    $region13: #{deg_loss.1} parent=1 // pred_fallthru
      _
    // Predicated region
    $region14: #{deg_loss.1} parent=1 // pred_check
      _
    $region15: #{deg_loss.1} parent=1 // pred_check_branch
      %53 = sbr.rel (0) target = $region17
    $region16: #{deg_loss.1} parent=1 // pred_region
      %s54 = sadd.s32 0, 0
      %p55 = scmp.lt.s32.totalorder %s54, 0
      %s56 = scalar_select %p55, %s54, 0
      %s57 = smul.u32 2, %s56
      %p58 = scmp.lt.s32.totalorder %s57, 1
      %s59 = scalar_select %p58, %s57, 1
      %s60 = smul.addr %s59, 8
      %s61 = scalar_lea.vmem %s3, %s60
      %s62 = sadd.s32 0, 0
      %p63 = scmp.lt.s32.totalorder %s62, 0
      %s64 = scalar_select %p63, %s62, 0
      %s65 = smul.u32 2, %s64
    $region17: #{deg_loss.1} parent=1 // pred_fallthru
      _
    %s66 = sadd.s32 0, 0
    %p67 = scmp.lt.s32.totalorder %s66, 0
    %s68 = scalar_select %p67, %s66, 0
    %s69 = smul.u32 2, %s68
    %p70 = scmp.lt.s32.totalorder %s69, 1
    %s71 = scalar_select %p70, %s69, 1
    %s72 = smul.addr %s71, 8
    %s73 = scalar_lea.vmem %s0, %s72
    %s74 = sadd.s32 0, 0
    %p75 = scmp.lt.s32.totalorder %s74, 0
    %s76 = scalar_select %p75, %s74, 0
    %s77 = smul.u32 2, %s76
    %p78 = scmp.lt.s32.totalorder %s77, 1
    %s79 = scalar_select %p78, %s77, 1
    %s80 = smul.addr %s79, 8
    %s81 = scalar_lea.vmem %s1, %s80
    %s82 = sadd.s32 0, 0
    %p83 = scmp.lt.s32.totalorder %s82, 0
    %s84 = scalar_select %p83, %s82, 0
    %s85 = smul.u32 2, %s84
    %p86 = scmp.lt.s32.totalorder %s85, 1
    %s87 = scalar_select %p86, %s85, 1
    %s88 = smul.addr %s87, 8
    %s89 = scalar_lea.vmem %s2, %s88
    %s90 = sadd.s32 0, 0
    %p91 = scmp.lt.s32.totalorder %s90, 0
    %s92 = scalar_select %p91, %s90, 0
    %s93 = smul.u32 2, %s92
    %p94 = scmp.lt.s32.totalorder %s93, 1
    %s95 = scalar_select %p94, %s93, 1
    %s96 = smul.addr %s95, 8
    %s97 = scalar_lea.vmem %s3, %s96
    %s98 = sadd.s32 0, 0
    %p99 = scmp.lt.s32.totalorder %s98, 0
    %s100 = scalar_select %p99, %s98, 0
    %s101 = smul.u32 2, %s100
    %p102 = scmp.lt.s32.totalorder %s101, 1
    %s103 = scalar_select %p102, %s101, 1
    %s104 = smul.addr %s103, 8
    %s105 = scalar_lea.vmem %s0, %s104
    %s106 = sadd.s32 0, 0
    %p107 = scmp.lt.s32.totalorder %s106, 0
    %s108 = scalar_select %p107, %s106, 0
    %s109 = smul.u32 2, %s108
    %s110 = sadd.s32 0, 0
    %p111 = scmp.lt.s32.totalorder %s110, 0
    %s112 = scalar_select %p111, %s110, 0
    %s113 = smul.u32 2, %s112
    %p114 = scmp.lt.s32.totalorder %s113, 1
    %s115 = scalar_select %p114, %s113, 1
    %s116 = smul.addr %s115, 8
    %s117 = scalar_lea.vmem %s1, %s116
    %s118 = sadd.s32 0, 0
    %p119 = scmp.lt.s32.totalorder %s118, 0
    %s120 = scalar_select %p119, %s118, 0
    %s121 = smul.u32 2, %s120
    %s122 = sadd.s32 0, 0
    %p123 = scmp.lt.s32.totalorder %s122, 0
    %s124 = scalar_select %p123, %s122, 0
    %s125 = smul.u32 2, %s124
    %p126 = scmp.lt.s32.totalorder %s125, 1
    %s127 = scalar_select %p126, %s125, 1
    %s128 = smul.addr %s127, 8
    %s129 = scalar_lea.vmem %s2, %s128
    %s130 = sadd.s32 0, 0
    %p131 = scmp.lt.s32.totalorder %s130, 0
    %s132 = scalar_select %p131, %s130, 0
    %s133 = smul.u32 2, %s132
    %s134 = sadd.s32 0, 0
    %p135 = scmp.lt.s32.totalorder %s134, 0
    %s136 = scalar_select %p135, %s134, 0
    %s137 = smul.u32 2, %s136
    %p138 = scmp.lt.s32.totalorder %s137, 1
    %s139 = scalar_select %p138, %s137, 1
    %s140 = smul.addr %s139, 8
    %s141 = scalar_lea.vmem %s3, %s140
    %s142 = sadd.s32 0, 0
    %p143 = scmp.lt.s32.totalorder %s142, 0
    %s144 = scalar_select %p143, %s142, 0
    %s145 = smul.u32 2, %s144
    %p146 = scmp.eq.s32.totalorder 0, 0
    // Predicated region
    $region18: #{deg_loss.1} parent=1 // pred_check
      %p147 = pneg %p146
    $region19: #{deg_loss.1} parent=1 // pred_check_branch
      %149 = sbr.rel (%p147) target = $region21
    $region20: #{deg_loss.1} parent=1 // pred_region
      %150 = vst [vmem:[#allocation2] sm:$0xff] 0.0
      %151 = vst [vmem:[#allocation2 + $0x8] sm:$0xff] 0.0
      %152 = vst [vmem:[#allocation3] sm:$0xff] 0.0
      %153 = vst [vmem:[#allocation3 + $0x8] sm:$0xff] 0.0
    $region21: #{deg_loss.1} parent=1 // pred_fallthru
      _
    %v154 = vld [vmem:[#allocation2] sm:$0xff]
    %v155 = vld [vmem:[#allocation2 + $0x8] sm:$0xff]
    %v156 = vld [vmem:[%s105] sm:$0xff]
    %v157 = vld [vmem:[%s105 + $0x8] sm:$0xff]
    %v158 = vld [vmem:[%s117] sm:$0xff]
    %v159 = vld [vmem:[%s117 + $0x8] sm:$0xff]
    %v160 = vsub.f32 %v156, %v158
    %v161 = vsub.f32 %v157, %v159
    %v162 = vand.u32 2147483647, %v160
    %v163 = vand.u32 2147483647, %v161
    %v164 = vand.u32 2147483647, %v156
    %v165 = vand.u32 2147483647, %v157
    %v166 = vand.u32 2147483647, %v158
    %v167 = vand.u32 2147483647, %v159
    %v168 = vadd.f32 %v164, %v166
    %v169 = vadd.f32 %v165, %v167
    %v170 = vmax.f32 %v168, 1.1754944e-38
    %v171 = vmax.f32 %v169, 1.1754944e-38
    %v172 = vrcp.pop %v170
    %v173 = vrcp.pop %v171
    %v174 = vmul.f32 %v170, %v172
    %v175 = vmul.f32 %v171, %v173
    %v176 = vsub.f32 2.0, %v174
    %v177 = vsub.f32 2.0, %v175
    %v178 = vmul.f32 %v172, %v176
    %v179 = vmul.f32 %v173, %v177
    %v180 = vmul.f32 %v162, %v178
    %v181 = vmul.f32 %v163, %v179
    %v182 = vadd.f32 %v154, %v180
    %v183 = vadd.f32 %v155, %v181
    %184 = vst [vmem:[#allocation2] sm:$0xff] %v182
    %185 = vst [vmem:[#allocation2 + $0x8] sm:$0xff] %v183
    %v186 = vld [vmem:[#allocation3] sm:$0xff]
    %v187 = vld [vmem:[#allocation3 + $0x8] sm:$0xff]
    %v188 = vld [vmem:[%s129] sm:$0xff]
    %v189 = vld [vmem:[%s129 + $0x8] sm:$0xff]
    %v190 = vld [vmem:[%s141] sm:$0xff]
    %v191 = vld [vmem:[%s141 + $0x8] sm:$0xff]
    %v192 = vsub.f32 %v188, %v190
    %v193 = vsub.f32 %v189, %v191
    %v194 = vand.u32 2147483647, %v192
    %v195 = vand.u32 2147483647, %v193
    %v196 = vand.u32 2147483647, %v188
    %v197 = vand.u32 2147483647, %v189
    %v198 = vand.u32 2147483647, %v190
    %v199 = vand.u32 2147483647, %v191
    %v200 = vadd.f32 %v196, %v198
    %v201 = vadd.f32 %v197, %v199
    %v202 = vmax.f32 %v200, 1.1754944e-38
    %v203 = vmax.f32 %v201, 1.1754944e-38
    %v204 = vrcp.pop %v202
    %v205 = vrcp.pop %v203
    %v206 = vmul.f32 %v202, %v204
    %v207 = vmul.f32 %v203, %v205
    %v208 = vsub.f32 2.0, %v206
    %v209 = vsub.f32 2.0, %v207
    %v210 = vmul.f32 %v204, %v208
    %v211 = vmul.f32 %v205, %v209
    %v212 = vmul.f32 %v194, %v210
    %v213 = vmul.f32 %v195, %v211
    %v214 = vadd.f32 %v186, %v212
    %v215 = vadd.f32 %v187, %v213
    %216 = vst [vmem:[#allocation3] sm:$0xff] %v214
    %217 = vst [vmem:[#allocation3 + $0x8] sm:$0xff] %v215
    // Predicated region
    $region22: #{deg_loss.1} parent=1 // pred_check
      %p218 = pneg %p146
    $region23: #{deg_loss.1} parent=1 // pred_check_branch
      %220 = sbr.rel (%p218) target = $region25
    $region24: #{deg_loss.1} parent=1 // pred_region
      %v221 = vld [vmem:[#allocation2] sm:$0xff]
      %v222 = vld [vmem:[#allocation2 + $0x8] sm:$0xff]
      %v223 = vadd.f32 %v221, %v222
      %v224 = vrot.slane %v223, 4
      %v225 = vadd.f32 %v223, %v224
      %v226 = vrot.slane %v225, 2
      %v227 = vadd.f32 %v225, %v226
      %v228 = vrot.slane %v227, 1
      %v229 = vadd.f32 %v227, %v228
      %230 = vadd.xlane.f32.xlu0 %v229
      %v231 = vpop.xlane.xlu0 %230
      %s232 = vtos %v231
      %s233 = scalar_lea.smem [#allocation4], 0
      %234 = sst [smem:[%s233]] %s232
      %v235 = vld [vmem:[#allocation3] sm:$0xff]
      %v236 = vld [vmem:[#allocation3 + $0x8] sm:$0xff]
      %v237 = vadd.f32 %v235, %v236
      %v238 = vrot.slane %v237, 4
      %v239 = vadd.f32 %v237, %v238
      %v240 = vrot.slane %v239, 2
      %v241 = vadd.f32 %v239, %v240
      %v242 = vrot.slane %v241, 1
      %v243 = vadd.f32 %v241, %v242
      %244 = vadd.xlane.f32.xlu0 %v243
      %v245 = vpop.xlane.xlu0 %244
      %s246 = vtos %v245
      %s247 = scalar_lea.smem [#allocation4], 1
      %248 = sst [smem:[%s247]] %s246
    $region25: #{deg_loss.1} parent=1 // pred_fallthru
      _
    // Predicated region
    $region26: #{deg_loss.1} parent=1 // pred_check
      _
    $region27: #{deg_loss.1} parent=1 // pred_check_branch
      %250 = sbr.rel (0) target = $region29
    $region28: #{deg_loss.1} parent=1 // pred_region
      %s252 = ssub.s32 16, 16
      %253 = vsyncadd [#allocation5], %s252
      %s255 = sshll.u32 %s4, 4
      %s256 = int_to_ptr.vmem [resolvable:$true] %s255
      %258 = dma.smem_to_vmem [#allocation4], 16, %s256, [#allocation5]
    $region29: #{deg_loss.1} parent=1 // pred_fallthru
      _
    // Predicated region
    $region30: #{deg_loss.1} parent=1 // pred_check
      _
    $region31: #{deg_loss.1} parent=1 // pred_check_branch
      %260 = sbr.rel (0) target = $region33
    $region32: #{deg_loss.1} parent=1 // pred_region
      %261 = dma.done [#allocation5], 16
    $region33: #{deg_loss.1} parent=1 // pred_fallthru
      _
    %262 = sfence
    %263 = vsyncpa [#allocation5], 1

</llo_original>
